<compile_context>
chip_gen: v5e
topology: v5e:2x2
jax: 0.10.0
libtpu: 0.0.40
codegen_flags: <defaults>
</compile_context>

<pallas_src>
import jax
import jax.numpy as jnp
from jax.experimental import pallas as pl
from jax.experimental.pallas import tpu as pltpu

ACTION_SIZE = 1
STATE_SIZE = 4
IN_DIM = STATE_SIZE + ACTION_SIZE      # 5
IN_DIM_PAD = 8                         # pad K: 5 -> 8 (sublane friendly)
HIDDEN = 256
OUT_DIM = STATE_SIZE                   # 4
OUT_DIM_PAD = 128                      # pad N: 4 -> 128 (lane-dense stores)
TM_MAX = 512                           # max batch rows per grid step


def _round_up(n, m):
    return (n + m - 1) // m * m


def _choose_tile(batch):
    """Pick (tm, padded_batch) minimizing padding waste for the given batch."""
    b8 = _round_up(max(batch, 1), 8)
    if b8 <= TM_MAX:
        return b8, b8
    g = pl.cdiv(b8, TM_MAX)                 # number of grid steps
    tm = _round_up(pl.cdiv(b8, g), 8)       # rows per step, 8-aligned
    return tm, g * tm


def mlp_kernel(x_ref,
               w1_ref, b1_ref,
               w2_ref, b2_ref,
               w3_ref, b3_ref,
               w4_ref, b4_ref,
               o_ref):
    # bf16 operands into the MXU, f32 accumulation.  Bias-add + ReLU in f32
    # (safe on v5e's VPU), cast back to bf16 before the next matmul.
    h = jnp.dot(x_ref[...], w1_ref[...], preferred_element_type=jnp.float32)
    h = jnp.maximum(h + b1_ref[...], 0.0).astype(jnp.bfloat16)

    h = jnp.dot(h, w2_ref[...], preferred_element_type=jnp.float32)
    h = jnp.maximum(h + b2_ref[...], 0.0).astype(jnp.bfloat16)

    h = jnp.dot(h, w3_ref[...], preferred_element_type=jnp.float32)
    h = jnp.maximum(h + b3_ref[...], 0.0).astype(jnp.bfloat16)

    y = jnp.dot(h, w4_ref[...], preferred_element_type=jnp.float32) + b4_ref[...]
    o_ref[...] = y.astype(o_ref.dtype)


@jax.jit
def mlp_forward(x, params):
    (w1, b1), (w2, b2), (w3, b3), (w4, b4) = params
    B = x.shape[0]

    tm, b_pad = _choose_tile(B)

    # Wrapper-side padding & bf16 casts (done once per call by XLA).
    xp = jnp.zeros((b_pad, IN_DIM_PAD), jnp.bfloat16)
    xp = xp.at[:B, :IN_DIM].set(x.astype(jnp.bfloat16))

    w1p = jnp.zeros((IN_DIM_PAD, HIDDEN), jnp.bfloat16)
    w1p = w1p.at[:IN_DIM, :].set(w1.astype(jnp.bfloat16))
    w2p = w2.astype(jnp.bfloat16)
    w3p = w3.astype(jnp.bfloat16)
    w4p = jnp.zeros((HIDDEN, OUT_DIM_PAD), jnp.bfloat16)
    w4p = w4p.at[:, :OUT_DIM].set(w4.astype(jnp.bfloat16))

    b1p = b1.astype(jnp.float32)
    b2p = b2.astype(jnp.float32)
    b3p = b3.astype(jnp.float32)
    b4p = jnp.zeros((1, OUT_DIM_PAD), jnp.float32)
    b4p = b4p.at[:, :OUT_DIM].set(b4.astype(jnp.float32))

    # Weights / biases: full-array blocks with a constant index_map so they
    # stay VMEM-resident (no re-DMA) across every batch-tile step.
    def resident(a):
        return pl.BlockSpec(a.shape, lambda i, _nd=a.ndim: (0,) * _nd)

    out_pad = pl.pallas_call(
        mlp_kernel,
        out_shape=jax.ShapeDtypeStruct((b_pad, OUT_DIM_PAD), jnp.float32),
        grid_spec=pl.GridSpec(
            grid=(b_pad // tm,),
            in_specs=[pl.BlockSpec((tm, IN_DIM_PAD), lambda i: (i, 0)),
                      resident(w1p), resident(b1p),
                      resident(w2p), resident(b2p),
                      resident(w3p), resident(b3p),
                      resident(w4p), resident(b4p)],
            out_specs=pl.BlockSpec((tm, OUT_DIM_PAD), lambda i: (i, 0)),
        ),
        compiler_params=pltpu.CompilerParams(
            dimension_semantics=("parallel",),   # v7x: shard batch over 2 TCs
            vmem_limit_bytes=32 << 20,
        ),
    )(xp, w1p, b1p, w2p, b2p, w3p, b3p, w4p, b4p)

    return out_pad[:B, :OUT_DIM]


def init_params(key):
    """Deterministic init mimicking PyTorch nn.Linear default:
    U(-1/sqrt(fan_in), 1/sqrt(fan_in)) for both weight and bias.
    Weights stored (in_features, out_features) so y = x @ W + b."""
    dims = [(IN_DIM, HIDDEN), (HIDDEN, HIDDEN), (HIDDEN, HIDDEN), (HIDDEN, OUT_DIM)]
    params = []
    for fan_in, fan_out in dims:
        key, kw, kb = jax.random.split(key, 3)
        bound = 1.0 / jnp.sqrt(float(fan_in))
        w = jax.random.uniform(kw, (fan_in, fan_out), jnp.float32, -bound, bound)
        b = jax.random.uniform(kb, (1, fan_out), jnp.float32, -bound, bound)
        params.append((w, b))
    return params


def reference_forward(x, params):
    """Pure-JAX reference emulating the kernel's precision path
    (bf16 operands into each matmul, f32 accumulation / bias / ReLU)."""
    h = x.astype(jnp.bfloat16)
    n = len(params)
    for i, (w, b) in enumerate(params):
        h = jnp.dot(h, w.astype(jnp.bfloat16),
                    preferred_element_type=jnp.float32) + b.astype(jnp.float32)
        if i < n - 1:
            h = jnp.maximum(h, 0.0).astype(jnp.bfloat16)
    return h


if __name__ == "__main__":
    key = jax.random.PRNGKey(0)
    key, kx = jax.random.split(key)
    params = init_params(key)

    # Small-batch case (single grid step, tm == 8).
    batch = 8
    x = jax.random.normal(kx, (batch, IN_DIM), jnp.float32)
    out = jax.block_until_ready(mlp_forward(x, params))
    ref = reference_forward(x, params)
    assert out.shape == (batch, OUT_DIM)
    assert jnp.allclose(out, ref, atol=1e-2, rtol=1e-2), "mismatch (batch=8)"

    # Larger, non-multiple batch: exercises the multi-step grid + padding path
    # (B=600 -> 2 grid steps of 304 rows, padded batch 608).
    xb = jax.random.normal(jax.random.PRNGKey(1), (600, IN_DIM), jnp.float32)
    outb = jax.block_until_ready(mlp_forward(xb, params))
    refb = reference_forward(xb, params)
    assert outb.shape == (600, OUT_DIM)
    assert jnp.allclose(outb, refb, atol=1e-2, rtol=1e-2), "mismatch (batch=600)"

    print("KERNEL_OK")
</pallas_src>

<mosaic_0001>
module attributes {stable_mosaic.version = 11 : i64} {
  func.func @mlp_kernel(%arg0: i32, %arg1: memref<8x8xbf16, #tpu.memory_space<vmem>>, %arg2: memref<8x256xbf16, #tpu.memory_space<vmem>>, %arg3: memref<1x256xf32, #tpu.memory_space<vmem>>, %arg4: memref<256x256xbf16, #tpu.memory_space<vmem>>, %arg5: memref<1x256xf32, #tpu.memory_space<vmem>>, %arg6: memref<256x256xbf16, #tpu.memory_space<vmem>>, %arg7: memref<1x256xf32, #tpu.memory_space<vmem>>, %arg8: memref<256x128xbf16, #tpu.memory_space<vmem>>, %arg9: memref<1x128xf32, #tpu.memory_space<vmem>>, %arg10: memref<8x128xf32, #tpu.memory_space<vmem>>) attributes {dimension_semantics = [#tpu.dimension_semantics<parallel>], iteration_bounds = array<i64: 1>, scalar_prefetch = 0 : i64, scratch_operands = 0 : i64, tpu.core_type = #tpu.core_type<tc>, window_params = [{transform_indices = @transform_0, window_bounds = array<i64: 8, 8>}, {pipeline_mode = #tpu.pipeline_mode<synchronous>, transform_indices = @transform_1, window_bounds = array<i64: 8, 256>}, {pipeline_mode = #tpu.pipeline_mode<synchronous>, transform_indices = @transform_2, window_bounds = array<i64: 1, 256>}, {pipeline_mode = #tpu.pipeline_mode<synchronous>, transform_indices = @transform_3, window_bounds = array<i64: 256, 256>}, {pipeline_mode = #tpu.pipeline_mode<synchronous>, transform_indices = @transform_4, window_bounds = array<i64: 1, 256>}, {pipeline_mode = #tpu.pipeline_mode<synchronous>, transform_indices = @transform_5, window_bounds = array<i64: 256, 256>}, {pipeline_mode = #tpu.pipeline_mode<synchronous>, transform_indices = @transform_6, window_bounds = array<i64: 1, 256>}, {pipeline_mode = #tpu.pipeline_mode<synchronous>, transform_indices = @transform_7, window_bounds = array<i64: 256, 128>}, {pipeline_mode = #tpu.pipeline_mode<synchronous>, transform_indices = @transform_8, window_bounds = array<i64: 1, 128>}, {transform_indices = @transform_9, window_bounds = array<i64: 8, 128>}]} {
    %c0 = arith.constant 0 : index
    %c0_0 = arith.constant 0 : index
    %0 = vector.load %arg1[%c0, %c0_0] : memref<8x8xbf16, #tpu.memory_space<vmem>>, vector<8x8xbf16>
    %c0_1 = arith.constant 0 : index
    %c0_2 = arith.constant 0 : index
    %1 = vector.load %arg2[%c0_1, %c0_2] : memref<8x256xbf16, #tpu.memory_space<vmem>>, vector<8x256xbf16>
    %cst = arith.constant dense<0.000000e+00> : vector<8x256xf32>
    %2 = tpu.matmul %0, %1, %cst {dimension_numbers = #tpu.dot_dimension_numbers<[1], [0], [0], [1], [0, 0, 1, 1], [], []>} : vector<8x8xbf16>, vector<8x256xbf16>, vector<8x256xf32> -> vector<8x256xf32>
    %c0_3 = arith.constant 0 : index
    %c0_4 = arith.constant 0 : index
    %3 = vector.load %arg3[%c0_3, %c0_4] : memref<1x256xf32, #tpu.memory_space<vmem>>, vector<1x256xf32>
    %4 = vector.broadcast %3 : vector<1x256xf32> to vector<8x256xf32>
    %5 = arith.addf %2, %4 : vector<8x256xf32>
    %cst_5 = arith.constant 0.000000e+00 : f32
    %6 = vector.broadcast %cst_5 : f32 to vector<8x256xf32>
    %7 = arith.maximumf %5, %6 : vector<8x256xf32>
    %8 = arith.truncf %7 : vector<8x256xf32> to vector<8x256xbf16>
    %c0_6 = arith.constant 0 : index
    %c0_7 = arith.constant 0 : index
    %9 = vector.load %arg4[%c0_6, %c0_7] : memref<256x256xbf16, #tpu.memory_space<vmem>>, vector<256x256xbf16>
    %cst_8 = arith.constant dense<0.000000e+00> : vector<8x256xf32>
    %10 = tpu.matmul %8, %9, %cst_8 {dimension_numbers = #tpu.dot_dimension_numbers<[1], [0], [0], [1], [0, 0, 1, 1], [], []>} : vector<8x256xbf16>, vector<256x256xbf16>, vector<8x256xf32> -> vector<8x256xf32>
    %c0_9 = arith.constant 0 : index
    %c0_10 = arith.constant 0 : index
    %11 = vector.load %arg5[%c0_9, %c0_10] : memref<1x256xf32, #tpu.memory_space<vmem>>, vector<1x256xf32>
    %12 = vector.broadcast %11 : vector<1x256xf32> to vector<8x256xf32>
    %13 = arith.addf %10, %12 : vector<8x256xf32>
    %cst_11 = arith.constant 0.000000e+00 : f32
    %14 = vector.broadcast %cst_11 : f32 to vector<8x256xf32>
    %15 = arith.maximumf %13, %14 : vector<8x256xf32>
    %16 = arith.truncf %15 : vector<8x256xf32> to vector<8x256xbf16>
    %c0_12 = arith.constant 0 : index
    %c0_13 = arith.constant 0 : index
    %17 = vector.load %arg6[%c0_12, %c0_13] : memref<256x256xbf16, #tpu.memory_space<vmem>>, vector<256x256xbf16>
    %cst_14 = arith.constant dense<0.000000e+00> : vector<8x256xf32>
    %18 = tpu.matmul %16, %17, %cst_14 {dimension_numbers = #tpu.dot_dimension_numbers<[1], [0], [0], [1], [0, 0, 1, 1], [], []>} : vector<8x256xbf16>, vector<256x256xbf16>, vector<8x256xf32> -> vector<8x256xf32>
    %c0_15 = arith.constant 0 : index
    %c0_16 = arith.constant 0 : index
    %19 = vector.load %arg7[%c0_15, %c0_16] : memref<1x256xf32, #tpu.memory_space<vmem>>, vector<1x256xf32>
    %20 = vector.broadcast %19 : vector<1x256xf32> to vector<8x256xf32>
    %21 = arith.addf %18, %20 : vector<8x256xf32>
    %cst_17 = arith.constant 0.000000e+00 : f32
    %22 = vector.broadcast %cst_17 : f32 to vector<8x256xf32>
    %23 = arith.maximumf %21, %22 : vector<8x256xf32>
    %24 = arith.truncf %23 : vector<8x256xf32> to vector<8x256xbf16>
    %c0_18 = arith.constant 0 : index
    %c0_19 = arith.constant 0 : index
    %25 = vector.load %arg8[%c0_18, %c0_19] : memref<256x128xbf16, #tpu.memory_space<vmem>>, vector<256x128xbf16>
    %cst_20 = arith.constant dense<0.000000e+00> : vector<8x128xf32>
    %26 = tpu.matmul %24, %25, %cst_20 {dimension_numbers = #tpu.dot_dimension_numbers<[1], [0], [0], [1], [0, 0, 1, 1], [], []>} : vector<8x256xbf16>, vector<256x128xbf16>, vector<8x128xf32> -> vector<8x128xf32>
    %c0_21 = arith.constant 0 : index
    %c0_22 = arith.constant 0 : index
    %27 = vector.load %arg9[%c0_21, %c0_22] : memref<1x128xf32, #tpu.memory_space<vmem>>, vector<1x128xf32>
    %28 = vector.broadcast %27 : vector<1x128xf32> to vector<8x128xf32>
    %29 = arith.addf %26, %28 : vector<8x128xf32>
    %c0_23 = arith.constant 0 : index
    %c0_24 = arith.constant 0 : index
    %30 = vector.load %arg10[%c0_23, %c0_24] : memref<8x128xf32, #tpu.memory_space<vmem>>, vector<8x128xf32>
    tpu.vector_store %arg10[%c0_23, %c0_24], %29 {strides = array<i32>} : memref<8x128xf32, #tpu.memory_space<vmem>>, vector<8x128xf32>,
    return
  }
  func.func @transform_0(%arg0: i32) -> (i32, i32) {
    %c0_i32 = arith.constant 0 : i32
    %c0_i32_0 = arith.constant 0 : i32
    return %arg0, %c0_i32 : i32, i32
  }
  func.func @transform_1(%arg0: i32) -> (i32, i32) {
    %c0_i32 = arith.constant 0 : i32
    %c0_i32_0 = arith.constant 0 : i32
    %c0_i32_1 = arith.constant 0 : i32
    return %c0_i32, %c0_i32_0 : i32, i32
  }
  func.func @transform_2(%arg0: i32) -> (i32, i32) {
    %c0_i32 = arith.constant 0 : i32
    %c0_i32_0 = arith.constant 0 : i32
    %c0_i32_1 = arith.constant 0 : i32
    return %c0_i32, %c0_i32_0 : i32, i32
  }
  func.func @transform_3(%arg0: i32) -> (i32, i32) {
    %c0_i32 = arith.constant 0 : i32
    %c0_i32_0 = arith.constant 0 : i32
    %c0_i32_1 = arith.constant 0 : i32
    return %c0_i32, %c0_i32_0 : i32, i32
  }
  func.func @transform_4(%arg0: i32) -> (i32, i32) {
    %c0_i32 = arith.constant 0 : i32
    %c0_i32_0 = arith.constant 0 : i32
    %c0_i32_1 = arith.constant 0 : i32
    return %c0_i32, %c0_i32_0 : i32, i32
  }
  func.func @transform_5(%arg0: i32) -> (i32, i32) {
    %c0_i32 = arith.constant 0 : i32
    %c0_i32_0 = arith.constant 0 : i32
    %c0_i32_1 = arith.constant 0 : i32
    return %c0_i32, %c0_i32_0 : i32, i32
  }
  func.func @transform_6(%arg0: i32) -> (i32, i32) {
    %c0_i32 = arith.constant 0 : i32
    %c0_i32_0 = arith.constant 0 : i32
    %c0_i32_1 = arith.constant 0 : i32
    return %c0_i32, %c0_i32_0 : i32, i32
  }
  func.func @transform_7(%arg0: i32) -> (i32, i32) {
    %c0_i32 = arith.constant 0 : i32
    %c0_i32_0 = arith.constant 0 : i32
    %c0_i32_1 = arith.constant 0 : i32
    return %c0_i32, %c0_i32_0 : i32, i32
  }
  func.func @transform_8(%arg0: i32) -> (i32, i32) {
    %c0_i32 = arith.constant 0 : i32
    %c0_i32_0 = arith.constant 0 : i32
    %c0_i32_1 = arith.constant 0 : i32
    return %c0_i32, %c0_i32_0 : i32, i32
  }
  func.func @transform_9(%arg0: i32) -> (i32, i32) {
    %c0_i32 = arith.constant 0 : i32
    %c0_i32_0 = arith.constant 0 : i32
    return %arg0, %c0_i32 : i32, i32
  }
}

</mosaic_0001>

<llo_original>
// kernel: mlp_forward.1
$region0: #{mlp_forward.1}
  #allocation0 [shape = 'u32[]', space=smem, size = 0x4, offset = 0x4, fixed_abs, tag = 'smem constant byte address 0x4 - core index']
  #allocation1 [shape = 'u32[72,128]{1,0:T(1,128)}', space=vmem, size = 0x9000, scoped, tag = 'internal scratch']
  %s0 = inlined_call_operand.vmem [shape: bf16[8,8], index: 0, kind: input, shape index: {}]
  %s1 = inlined_call_operand.vmem [shape: bf16[8,256], index: 1, kind: input, shape index: {}]
  %s2 = inlined_call_operand.vmem [shape: f32[1,256], index: 2, kind: input, shape index: {}]
  %s3 = inlined_call_operand.vmem [shape: bf16[256,256], index: 3, kind: input, shape index: {}]
  %s4 = inlined_call_operand.vmem [shape: f32[1,256], index: 4, kind: input, shape index: {}]
  %s5 = inlined_call_operand.vmem [shape: bf16[256,256], index: 5, kind: input, shape index: {}]
  %s6 = inlined_call_operand.vmem [shape: f32[1,256], index: 6, kind: input, shape index: {}]
  %s7 = inlined_call_operand.vmem [shape: bf16[256,128], index: 7, kind: input, shape index: {}]
  %s8 = inlined_call_operand.vmem [shape: f32[1,128], index: 8, kind: input, shape index: {}]
  %s9 = inlined_call_operand.vmem [shape: f32[8,128], index: 9, kind: output, shape index: {}]
  %s10 = sld [smem:[#allocation0]]
  $region46: #{mlp_forward.1} parent=0
    _
  %s12 = ssub.s32 1, %s10
  %s13 = scalar_select 0, %s12, %s10
  // Predicated region
  $region2: #{mlp_forward.1} parent=0 // pred_check
    _
  $region3: #{mlp_forward.1} parent=0 // pred_check_branch
    %15 = sbr.rel (0) target = $region5
  $region4: #{mlp_forward.1} parent=0 // pred_region
    _
  $region5: #{mlp_forward.1} parent=0 // pred_fallthru
    _
  // Predicated region
  $region6: #{mlp_forward.1} parent=0 // pred_check
    _
  $region7: #{mlp_forward.1} parent=0 // pred_check_branch
    %17 = sbr.rel (0) target = $region9
  $region8: #{mlp_forward.1} parent=0 // pred_region
    _
  $region9: #{mlp_forward.1} parent=0 // pred_fallthru
    _
  // Predicated region
  $region10: #{mlp_forward.1} parent=0 // pred_check
    _
  $region11: #{mlp_forward.1} parent=0 // pred_check_branch
    %19 = sbr.rel (0) target = $region13
  $region12: #{mlp_forward.1} parent=0 // pred_region
    _
  $region13: #{mlp_forward.1} parent=0 // pred_fallthru
    _
  // Predicated region
  $region14: #{mlp_forward.1} parent=0 // pred_check
    _
  $region15: #{mlp_forward.1} parent=0 // pred_check_branch
    %21 = sbr.rel (0) target = $region17
  $region16: #{mlp_forward.1} parent=0 // pred_region
    _
  $region17: #{mlp_forward.1} parent=0 // pred_fallthru
    _
  // Predicated region
  $region18: #{mlp_forward.1} parent=0 // pred_check
    _
  $region19: #{mlp_forward.1} parent=0 // pred_check_branch
    %23 = sbr.rel (0) target = $region21
  $region20: #{mlp_forward.1} parent=0 // pred_region
    _
  $region21: #{mlp_forward.1} parent=0 // pred_fallthru
    _
  // Predicated region
  $region22: #{mlp_forward.1} parent=0 // pred_check
    _
  $region23: #{mlp_forward.1} parent=0 // pred_check_branch
    %25 = sbr.rel (0) target = $region25
  $region24: #{mlp_forward.1} parent=0 // pred_region
    _
  $region25: #{mlp_forward.1} parent=0 // pred_fallthru
    _
  // Predicated region
  $region26: #{mlp_forward.1} parent=0 // pred_check
    _
  $region27: #{mlp_forward.1} parent=0 // pred_check_branch
    %27 = sbr.rel (0) target = $region29
  $region28: #{mlp_forward.1} parent=0 // pred_region
    _
  $region29: #{mlp_forward.1} parent=0 // pred_fallthru
    _
  // Predicated region
  $region30: #{mlp_forward.1} parent=0 // pred_check
    _
  $region31: #{mlp_forward.1} parent=0 // pred_check_branch
    %29 = sbr.rel (0) target = $region33
  $region32: #{mlp_forward.1} parent=0 // pred_region
    _
  $region33: #{mlp_forward.1} parent=0 // pred_fallthru
    _
  // Predicated region
  $region34: #{mlp_forward.1} parent=0 // pred_check
    _
  $region35: #{mlp_forward.1} parent=0 // pred_check_branch
    %31 = sbr.rel (0) target = $region37
  $region36: #{mlp_forward.1} parent=0 // pred_region
    _
  $region37: #{mlp_forward.1} parent=0 // pred_fallthru
    _
  %v33 = vld [vmem:[%s0] sm:$0xf]
  %v34 = vld [vmem:[%s1] sm:$0xff]
  %v35 = vld [vmem:[%s2] sm:$0x3]
  %v37 = vperm.slane %v35, 0
  %v38 = vperm.slane %v35, 1
  %v42 = vunpack.c.l.b16 %v34
  %v43 = vunpack.c.h.b16 %v34
  %v44 = vpack.c.b16 %v42, %v42
  %v45 = vpack.c.b16 %v43, %v43
  %vm46 = vcmask 64512
  %v48 = vsel %vm46, %v33, 0
  %vm50 = vcmask 1043456
  %v52 = vsel %vm50, %v44, 0
  %v55 = vsel %vm50, %v45, 0
  %57 = vmatpush.bf16.msra.mxu0 0
  %58 = vmatpush.bf16.msra.mxu0 0
  %59 = vmatpush.bf16.msra.mxu0 0
  %60 = vmatpush.bf16.msra.mxu0 0
  %61 = vmatpush.bf16.msra.mxu0 0
  %62 = vmatpush.bf16.msra.mxu0 0
  %63 = vmatpush.bf16.msra.mxu0 0
  %64 = vmatpush.bf16.msra.mxu0 %v52
  %65 = vmatmul.bf16.gmra.mxu0 %v48
  %v66 = vpop.f32.mrf.mxu0
  %v67 = vadd.f32 %v37, %v66
  %v68 = vpop.f32.mrf.mxu0
  %69 = vdwg.mxu0
  %70 = vmatpush.bf16.msra.mxu0 0
  %71 = vmatpush.bf16.msra.mxu0 0
  %72 = vmatpush.bf16.msra.mxu0 0
  %73 = vmatpush.bf16.msra.mxu0 0
  %74 = vmatpush.bf16.msra.mxu0 0
  %75 = vmatpush.bf16.msra.mxu0 0
  %76 = vmatpush.bf16.msra.mxu0 0
  %77 = vmatpush.bf16.msra.mxu0 %v55
  %78 = vmatmul.bf16.gmra.mxu0 %v48
  %v79 = vpop.f32.mrf.mxu0
  %v80 = vadd.f32 %v38, %v79
  %v81 = vpop.f32.mrf.mxu0
  %82 = vdwg.mxu0
  %v83 = vmax.f32 %v67, 0.0
  %v84 = vmax.f32 %v80, 0.0
  %v85 = vpack.c.bf16 %v83, %v83
  %v86 = vpack.c.bf16 %v84, %v84
  %v87 = vld [vmem:[%s3] sm:$0xff]
  %v88 = vld [vmem:[%s3 + $0x8] sm:$0xff]
  %v89 = vld [vmem:[%s3 + $0x10] sm:$0xff]
  %v90 = vld [vmem:[%s3 + $0x18] sm:$0xff]
  %v91 = vld [vmem:[%s3 + $0x20] sm:$0xff]
  %v92 = vld [vmem:[%s3 + $0x28] sm:$0xff]
  %v93 = vld [vmem:[%s3 + $0x30] sm:$0xff]
  %v94 = vld [vmem:[%s3 + $0x38] sm:$0xff]
  %v95 = vld [vmem:[%s3 + $0x40] sm:$0xff]
  %v96 = vld [vmem:[%s3 + $0x48] sm:$0xff]
  %v97 = vld [vmem:[%s3 + $0x50] sm:$0xff]
  %v98 = vld [vmem:[%s3 + $0x58] sm:$0xff]
  %v99 = vld [vmem:[%s3 + $0x60] sm:$0xff]
  %v100 = vld [vmem:[%s3 + $0x68] sm:$0xff]
  %v101 = vld [vmem:[%s3 + $0x70] sm:$0xff]
  %v102 = vld [vmem:[%s3 + $0x78] sm:$0xff]
  %v103 = vld [vmem:[%s3 + $0x80] sm:$0xff]
  %v104 = vld [vmem:[%s3 + $0x88] sm:$0xff]
  %v105 = vld [vmem:[%s3 + $0x90] sm:$0xff]
  %v106 = vld [vmem:[%s3 + $0x98] sm:$0xff]
  %v107 = vld [vmem:[%s3 + $0xa0] sm:$0xff]
  %v108 = vld [vmem:[%s3 + $0xa8] sm:$0xff]
  %v109 = vld [vmem:[%s3 + $0xb0] sm:$0xff]
  %v110 = vld [vmem:[%s3 + $0xb8] sm:$0xff]
  %v111 = vld [vmem:[%s3 + $0xc0] sm:$0xff]
  %v112 = vld [vmem:[%s3 + $0xc8] sm:$0xff]
  %v113 = vld [vmem:[%s3 + $0xd0] sm:$0xff]
  %v114 = vld [vmem:[%s3 + $0xd8] sm:$0xff]
  %v115 = vld [vmem:[%s3 + $0xe0] sm:$0xff]
  %v116 = vld [vmem:[%s3 + $0xe8] sm:$0xff]
  %v117 = vld [vmem:[%s3 + $0xf0] sm:$0xff]
  %v118 = vld [vmem:[%s3 + $0xf8] sm:$0xff]
  %v119 = vld [vmem:[%s4] sm:$0x3]
  %v121 = vperm.slane %v119, 0
  %v122 = vperm.slane %v119, 1
  %v157 = vunpack.c.l.b16 %v87
  %v158 = vunpack.c.h.b16 %v87
  %v159 = vunpack.c.l.b16 %v88
  %v160 = vunpack.c.h.b16 %v88
  %v161 = vunpack.c.l.b16 %v89
  %v162 = vunpack.c.h.b16 %v89
  %v163 = vunpack.c.l.b16 %v90
  %v164 = vunpack.c.h.b16 %v90
  %v165 = vunpack.c.l.b16 %v91
  %v166 = vunpack.c.h.b16 %v91
  %v167 = vunpack.c.l.b16 %v92
  %v168 = vunpack.c.h.b16 %v92
  %v169 = vunpack.c.l.b16 %v93
  %v170 = vunpack.c.h.b16 %v93
  %v171 = vunpack.c.l.b16 %v94
  %v172 = vunpack.c.h.b16 %v94
  %v173 = vunpack.c.l.b16 %v95
  %v174 = vunpack.c.h.b16 %v95
  %v175 = vunpack.c.l.b16 %v96
  %v176 = vunpack.c.h.b16 %v96
  %v177 = vunpack.c.l.b16 %v97
  %v178 = vunpack.c.h.b16 %v97
  %v179 = vunpack.c.l.b16 %v98
  %v180 = vunpack.c.h.b16 %v98
  %v181 = vunpack.c.l.b16 %v99
  %v182 = vunpack.c.h.b16 %v99
  %v183 = vunpack.c.l.b16 %v100
  %v184 = vunpack.c.h.b16 %v100
  %v185 = vunpack.c.l.b16 %v101
  %v186 = vunpack.c.h.b16 %v101
  %v187 = vunpack.c.l.b16 %v102
  %v188 = vunpack.c.h.b16 %v102
  %v189 = vunpack.c.l.b16 %v103
  %v190 = vunpack.c.h.b16 %v103
  %v191 = vunpack.c.l.b16 %v104
  %v192 = vunpack.c.h.b16 %v104
  %v193 = vunpack.c.l.b16 %v105
  %v194 = vunpack.c.h.b16 %v105
  %v195 = vunpack.c.l.b16 %v106
  %v196 = vunpack.c.h.b16 %v106
  %v197 = vunpack.c.l.b16 %v107
  %v198 = vunpack.c.h.b16 %v107
  %v199 = vunpack.c.l.b16 %v108
  %v200 = vunpack.c.h.b16 %v108
  %v201 = vunpack.c.l.b16 %v109
  %v202 = vunpack.c.h.b16 %v109
  %v203 = vunpack.c.l.b16 %v110
  %v204 = vunpack.c.h.b16 %v110
  %v205 = vunpack.c.l.b16 %v111
  %v206 = vunpack.c.h.b16 %v111
  %v207 = vunpack.c.l.b16 %v112
  %v208 = vunpack.c.h.b16 %v112
  %v209 = vunpack.c.l.b16 %v113
  %v210 = vunpack.c.h.b16 %v113
  %v211 = vunpack.c.l.b16 %v114
  %v212 = vunpack.c.h.b16 %v114
  %v213 = vunpack.c.l.b16 %v115
  %v214 = vunpack.c.h.b16 %v115
  %v215 = vunpack.c.l.b16 %v116
  %v216 = vunpack.c.h.b16 %v116
  %v217 = vunpack.c.l.b16 %v117
  %v218 = vunpack.c.h.b16 %v117
  %v219 = vunpack.c.l.b16 %v118
  %v220 = vunpack.c.h.b16 %v118
  %v221 = vpack.c.b16 %v159, %v157
  %v222 = vpack.c.b16 %v160, %v158
  %v223 = vpack.c.b16 %v163, %v161
  %v224 = vpack.c.b16 %v164, %v162
  %v225 = vpack.c.b16 %v167, %v165
  %v226 = vpack.c.b16 %v168, %v166
  %v227 = vpack.c.b16 %v171, %v169
  %v228 = vpack.c.b16 %v172, %v170
  %v229 = vpack.c.b16 %v175, %v173
  %v230 = vpack.c.b16 %v176, %v174
  %v231 = vpack.c.b16 %v179, %v177
  %v232 = vpack.c.b16 %v180, %v178
  %v233 = vpack.c.b16 %v183, %v181
  %v234 = vpack.c.b16 %v184, %v182
  %v235 = vpack.c.b16 %v187, %v185
  %v236 = vpack.c.b16 %v188, %v186
  %v237 = vpack.c.b16 %v191, %v189
  %v238 = vpack.c.b16 %v192, %v190
  %v239 = vpack.c.b16 %v195, %v193
  %v240 = vpack.c.b16 %v196, %v194
  %v241 = vpack.c.b16 %v199, %v197
  %v242 = vpack.c.b16 %v200, %v198
  %v243 = vpack.c.b16 %v203, %v201
  %v244 = vpack.c.b16 %v204, %v202
  %v245 = vpack.c.b16 %v207, %v205
  %v246 = vpack.c.b16 %v208, %v206
  %v247 = vpack.c.b16 %v211, %v209
  %v248 = vpack.c.b16 %v212, %v210
  %v249 = vpack.c.b16 %v215, %v213
  %v250 = vpack.c.b16 %v216, %v214
  %v251 = vpack.c.b16 %v219, %v217
  %v252 = vpack.c.b16 %v220, %v218
  %285 = vmatpush.bf16.msra.mxu0 %v235
  %286 = vmatpush.bf16.msra.mxu0 %v233
  %287 = vmatpush.bf16.msra.mxu0 %v231
  %288 = vmatpush.bf16.msra.mxu0 %v229
  %289 = vmatpush.bf16.msra.mxu0 %v227
  %290 = vmatpush.bf16.msra.mxu0 %v225
  %291 = vmatpush.bf16.msra.mxu0 %v223
  %292 = vmatpush.bf16.msra.mxu0 %v221
  %293 = vmatmul.bf16.gmra.mxu0 %v85
  %v294 = vpop.f32.mrf.mxu0
  %v295 = vadd.f32 %v121, %v294
  %v296 = vpop.f32.mrf.mxu0
  %297 = vdwg.mxu0
  %298 = vmatpush.bf16.msra.mxu0 %v251
  %299 = vmatpush.bf16.msra.mxu0 %v249
  %300 = vmatpush.bf16.msra.mxu0 %v247
  %301 = vmatpush.bf16.msra.mxu0 %v245
  %302 = vmatpush.bf16.msra.mxu0 %v243
  %303 = vmatpush.bf16.msra.mxu0 %v241
  %304 = vmatpush.bf16.msra.mxu0 %v239
  %305 = vmatpush.bf16.msra.mxu0 %v237
  %306 = vmatmul.bf16.gmra.mxu0 %v86
  %v307 = vpop.f32.mrf.mxu0
  %v308 = vadd.f32 %v295, %v307
  %v309 = vpop.f32.mrf.mxu0
  %310 = vdwg.mxu0
  %311 = vmatpush.bf16.msra.mxu0 %v236
  %312 = vmatpush.bf16.msra.mxu0 %v234
  %313 = vmatpush.bf16.msra.mxu0 %v232
  %314 = vmatpush.bf16.msra.mxu0 %v230
  %315 = vmatpush.bf16.msra.mxu0 %v228
  %316 = vmatpush.bf16.msra.mxu0 %v226
  %317 = vmatpush.bf16.msra.mxu0 %v224
  %318 = vmatpush.bf16.msra.mxu0 %v222
  %319 = vmatmul.bf16.gmra.mxu0 %v85
  %v320 = vpop.f32.mrf.mxu0
  %v321 = vadd.f32 %v122, %v320
  %v322 = vpop.f32.mrf.mxu0
  %323 = vdwg.mxu0
  %324 = vmatpush.bf16.msra.mxu0 %v252
  %325 = vmatpush.bf16.msra.mxu0 %v250
  %326 = vmatpush.bf16.msra.mxu0 %v248
  %327 = vmatpush.bf16.msra.mxu0 %v246
  %328 = vmatpush.bf16.msra.mxu0 %v244
  %329 = vmatpush.bf16.msra.mxu0 %v242
  %330 = vmatpush.bf16.msra.mxu0 %v240
  %331 = vmatpush.bf16.msra.mxu0 %v238
  %332 = vmatmul.bf16.gmra.mxu0 %v86
  %v333 = vpop.f32.mrf.mxu0
  %v334 = vadd.f32 %v321, %v333
  %v335 = vpop.f32.mrf.mxu0
  %336 = vdwg.mxu0
  %v337 = vmax.f32 %v308, 0.0
  %v338 = vmax.f32 %v334, 0.0
  %v339 = vpack.c.bf16 %v337, %v337
  %v340 = vpack.c.bf16 %v338, %v338
  %v341 = vld [vmem:[%s5] sm:$0xff]
  %v342 = vld [vmem:[%s5 + $0x8] sm:$0xff]
  %v343 = vld [vmem:[%s5 + $0x10] sm:$0xff]
  %v344 = vld [vmem:[%s5 + $0x18] sm:$0xff]
  %v345 = vld [vmem:[%s5 + $0x20] sm:$0xff]
  %v346 = vld [vmem:[%s5 + $0x28] sm:$0xff]
  %v347 = vld [vmem:[%s5 + $0x30] sm:$0xff]
  %v348 = vld [vmem:[%s5 + $0x38] sm:$0xff]
  %v349 = vld [vmem:[%s5 + $0x40] sm:$0xff]
  %v350 = vld [vmem:[%s5 + $0x48] sm:$0xff]
  %v351 = vld [vmem:[%s5 + $0x50] sm:$0xff]
  %v352 = vld [vmem:[%s5 + $0x58] sm:$0xff]
  %v353 = vld [vmem:[%s5 + $0x60] sm:$0xff]
  %v354 = vld [vmem:[%s5 + $0x68] sm:$0xff]
  %v355 = vld [vmem:[%s5 + $0x70] sm:$0xff]
  %v356 = vld [vmem:[%s5 + $0x78] sm:$0xff]
  %v357 = vld [vmem:[%s5 + $0x80] sm:$0xff]
  %v358 = vld [vmem:[%s5 + $0x88] sm:$0xff]
  %v359 = vld [vmem:[%s5 + $0x90] sm:$0xff]
  %v360 = vld [vmem:[%s5 + $0x98] sm:$0xff]
  %v361 = vld [vmem:[%s5 + $0xa0] sm:$0xff]
  %v362 = vld [vmem:[%s5 + $0xa8] sm:$0xff]
  %v363 = vld [vmem:[%s5 + $0xb0] sm:$0xff]
  %v364 = vld [vmem:[%s5 + $0xb8] sm:$0xff]
  %v365 = vld [vmem:[%s5 + $0xc0] sm:$0xff]
  %v366 = vld [vmem:[%s5 + $0xc8] sm:$0xff]
  %v367 = vld [vmem:[%s5 + $0xd0] sm:$0xff]
  %v368 = vld [vmem:[%s5 + $0xd8] sm:$0xff]
  %v369 = vld [vmem:[%s5 + $0xe0] sm:$0xff]
  %v370 = vld [vmem:[%s5 + $0xe8] sm:$0xff]
  %v371 = vld [vmem:[%s5 + $0xf0] sm:$0xff]
  %v372 = vld [vmem:[%s5 + $0xf8] sm:$0xff]
  %v373 = vld [vmem:[%s6] sm:$0x3]
  %v375 = vperm.slane %v373, 0
  %v376 = vperm.slane %v373, 1
  %v411 = vunpack.c.l.b16 %v341
  %v412 = vunpack.c.h.b16 %v341
  %v413 = vunpack.c.l.b16 %v342
  %v414 = vunpack.c.h.b16 %v342
  %v415 = vunpack.c.l.b16 %v343
  %v416 = vunpack.c.h.b16 %v343
  %v417 = vunpack.c.l.b16 %v344
  %v418 = vunpack.c.h.b16 %v344
  %v419 = vunpack.c.l.b16 %v345
  %v420 = vunpack.c.h.b16 %v345
  %v421 = vunpack.c.l.b16 %v346
  %v422 = vunpack.c.h.b16 %v346
  %v423 = vunpack.c.l.b16 %v347
  %v424 = vunpack.c.h.b16 %v347
  %v425 = vunpack.c.l.b16 %v348
  %v426 = vunpack.c.h.b16 %v348
  %v427 = vunpack.c.l.b16 %v349
  %v428 = vunpack.c.h.b16 %v349
  %v429 = vunpack.c.l.b16 %v350
  %v430 = vunpack.c.h.b16 %v350
  %v431 = vunpack.c.l.b16 %v351
  %v432 = vunpack.c.h.b16 %v351
  %v433 = vunpack.c.l.b16 %v352
  %v434 = vunpack.c.h.b16 %v352
  %v435 = vunpack.c.l.b16 %v353
  %v436 = vunpack.c.h.b16 %v353
  %v437 = vunpack.c.l.b16 %v354
  %v438 = vunpack.c.h.b16 %v354
  %v439 = vunpack.c.l.b16 %v355
  %v440 = vunpack.c.h.b16 %v355
  %v441 = vunpack.c.l.b16 %v356
  %v442 = vunpack.c.h.b16 %v356
  %v443 = vunpack.c.l.b16 %v357
  %v444 = vunpack.c.h.b16 %v357
  %v445 = vunpack.c.l.b16 %v358
  %v446 = vunpack.c.h.b16 %v358
  %v447 = vunpack.c.l.b16 %v359
  %v448 = vunpack.c.h.b16 %v359
  %v449 = vunpack.c.l.b16 %v360
  %v450 = vunpack.c.h.b16 %v360
  %v451 = vunpack.c.l.b16 %v361
  %v452 = vunpack.c.h.b16 %v361
  %v453 = vunpack.c.l.b16 %v362
  %v454 = vunpack.c.h.b16 %v362
  %v455 = vunpack.c.l.b16 %v363
  %v456 = vunpack.c.h.b16 %v363
  %v457 = vunpack.c.l.b16 %v364
  %v458 = vunpack.c.h.b16 %v364
  %v459 = vunpack.c.l.b16 %v365
  %v460 = vunpack.c.h.b16 %v365
  %v461 = vunpack.c.l.b16 %v366
  %v462 = vunpack.c.h.b16 %v366
  %v463 = vunpack.c.l.b16 %v367
  %v464 = vunpack.c.h.b16 %v367
  %v465 = vunpack.c.l.b16 %v368
  %v466 = vunpack.c.h.b16 %v368
  %v467 = vunpack.c.l.b16 %v369
  %v468 = vunpack.c.h.b16 %v369
  %v469 = vunpack.c.l.b16 %v370
  %v470 = vunpack.c.h.b16 %v370
  %v471 = vunpack.c.l.b16 %v371
  %v472 = vunpack.c.h.b16 %v371
  %v473 = vunpack.c.l.b16 %v372
  %v474 = vunpack.c.h.b16 %v372
  %v475 = vpack.c.b16 %v413, %v411
  %v476 = vpack.c.b16 %v414, %v412
  %v477 = vpack.c.b16 %v417, %v415
  %v478 = vpack.c.b16 %v418, %v416
  %v479 = vpack.c.b16 %v421, %v419
  %v480 = vpack.c.b16 %v422, %v420
  %v481 = vpack.c.b16 %v425, %v423
  %v482 = vpack.c.b16 %v426, %v424
  %v483 = vpack.c.b16 %v429, %v427
  %v484 = vpack.c.b16 %v430, %v428
  %v485 = vpack.c.b16 %v433, %v431
  %v486 = vpack.c.b16 %v434, %v432
  %v487 = vpack.c.b16 %v437, %v435
  %v488 = vpack.c.b16 %v438, %v436
  %v489 = vpack.c.b16 %v441, %v439
  %v490 = vpack.c.b16 %v442, %v440
  %v491 = vpack.c.b16 %v445, %v443
  %v492 = vpack.c.b16 %v446, %v444
  %v493 = vpack.c.b16 %v449, %v447
  %v494 = vpack.c.b16 %v450, %v448
  %v495 = vpack.c.b16 %v453, %v451
  %v496 = vpack.c.b16 %v454, %v452
  %v497 = vpack.c.b16 %v457, %v455
  %v498 = vpack.c.b16 %v458, %v456
  %v499 = vpack.c.b16 %v461, %v459
  %v500 = vpack.c.b16 %v462, %v460
  %v501 = vpack.c.b16 %v465, %v463
  %v502 = vpack.c.b16 %v466, %v464
  %v503 = vpack.c.b16 %v469, %v467
  %v504 = vpack.c.b16 %v470, %v468
  %v505 = vpack.c.b16 %v473, %v471
  %v506 = vpack.c.b16 %v474, %v472
  %539 = vmatpush.bf16.msra.mxu0 %v489
  %540 = vmatpush.bf16.msra.mxu0 %v487
  %541 = vmatpush.bf16.msra.mxu0 %v485
  %542 = vmatpush.bf16.msra.mxu0 %v483
  %543 = vmatpush.bf16.msra.mxu0 %v481
  %544 = vmatpush.bf16.msra.mxu0 %v479
  %545 = vmatpush.bf16.msra.mxu0 %v477
  %546 = vmatpush.bf16.msra.mxu0 %v475
  %547 = vmatmul.bf16.gmra.mxu0 %v339
  %v548 = vpop.f32.mrf.mxu0
  %v549 = vadd.f32 %v375, %v548
  %v550 = vpop.f32.mrf.mxu0
  %551 = vdwg.mxu0
  %552 = vmatpush.bf16.msra.mxu0 %v505
  %553 = vmatpush.bf16.msra.mxu0 %v503
  %554 = vmatpush.bf16.msra.mxu0 %v501
  %555 = vmatpush.bf16.msra.mxu0 %v499
  %556 = vmatpush.bf16.msra.mxu0 %v497
  %557 = vmatpush.bf16.msra.mxu0 %v495
  %558 = vmatpush.bf16.msra.mxu0 %v493
  %559 = vmatpush.bf16.msra.mxu0 %v491
  %560 = vmatmul.bf16.gmra.mxu0 %v340
  %v561 = vpop.f32.mrf.mxu0
  %v562 = vadd.f32 %v549, %v561
  %v563 = vpop.f32.mrf.mxu0
  %564 = vdwg.mxu0
  %565 = vmatpush.bf16.msra.mxu0 %v490
  %566 = vmatpush.bf16.msra.mxu0 %v488
  %567 = vmatpush.bf16.msra.mxu0 %v486
  %568 = vmatpush.bf16.msra.mxu0 %v484
  %569 = vmatpush.bf16.msra.mxu0 %v482
  %570 = vmatpush.bf16.msra.mxu0 %v480
  %571 = vmatpush.bf16.msra.mxu0 %v478
  %572 = vmatpush.bf16.msra.mxu0 %v476
  %573 = vmatmul.bf16.gmra.mxu0 %v339
  %v574 = vpop.f32.mrf.mxu0
  %v575 = vadd.f32 %v376, %v574
  %v576 = vpop.f32.mrf.mxu0
  %577 = vdwg.mxu0
  %578 = vmatpush.bf16.msra.mxu0 %v506
  %579 = vmatpush.bf16.msra.mxu0 %v504
  %580 = vmatpush.bf16.msra.mxu0 %v502
  %581 = vmatpush.bf16.msra.mxu0 %v500
  %582 = vmatpush.bf16.msra.mxu0 %v498
  %583 = vmatpush.bf16.msra.mxu0 %v496
  %584 = vmatpush.bf16.msra.mxu0 %v494
  %585 = vmatpush.bf16.msra.mxu0 %v492
  %586 = vmatmul.bf16.gmra.mxu0 %v340
  %v587 = vpop.f32.mrf.mxu0
  %v588 = vadd.f32 %v575, %v587
  %v589 = vpop.f32.mrf.mxu0
  %590 = vdwg.mxu0
  %v591 = vmax.f32 %v562, 0.0
  %v592 = vmax.f32 %v588, 0.0
  %v593 = vpack.c.bf16 %v591, %v591
  %v594 = vpack.c.bf16 %v592, %v592
  %v595 = vld [vmem:[%s7] sm:$0xf]
  %v596 = vld [vmem:[%s7 + $0x4] sm:$0xf]
  %v597 = vld [vmem:[%s7 + $0x8] sm:$0xf]
  %v598 = vld [vmem:[%s7 + $0xc] sm:$0xf]
  %v599 = vld [vmem:[%s7 + $0x10] sm:$0xf]
  %v600 = vld [vmem:[%s7 + $0x14] sm:$0xf]
  %v601 = vld [vmem:[%s7 + $0x18] sm:$0xf]
  %v602 = vld [vmem:[%s7 + $0x1c] sm:$0xf]
  %v603 = vld [vmem:[%s7 + $0x20] sm:$0xf]
  %v604 = vld [vmem:[%s7 + $0x24] sm:$0xf]
  %v605 = vld [vmem:[%s7 + $0x28] sm:$0xf]
  %v606 = vld [vmem:[%s7 + $0x2c] sm:$0xf]
  %v607 = vld [vmem:[%s7 + $0x30] sm:$0xf]
  %v608 = vld [vmem:[%s7 + $0x34] sm:$0xf]
  %v609 = vld [vmem:[%s7 + $0x38] sm:$0xf]
  %v610 = vld [vmem:[%s7 + $0x3c] sm:$0xf]
  %v611 = vld [vmem:[%s7 + $0x40] sm:$0xf]
  %v612 = vld [vmem:[%s7 + $0x44] sm:$0xf]
  %v613 = vld [vmem:[%s7 + $0x48] sm:$0xf]
  %v614 = vld [vmem:[%s7 + $0x4c] sm:$0xf]
  %v615 = vld [vmem:[%s7 + $0x50] sm:$0xf]
  %v616 = vld [vmem:[%s7 + $0x54] sm:$0xf]
  %v617 = vld [vmem:[%s7 + $0x58] sm:$0xf]
  %v618 = vld [vmem:[%s7 + $0x5c] sm:$0xf]
  %v619 = vld [vmem:[%s7 + $0x60] sm:$0xf]
  %v620 = vld [vmem:[%s7 + $0x64] sm:$0xf]
  %v621 = vld [vmem:[%s7 + $0x68] sm:$0xf]
  %v622 = vld [vmem:[%s7 + $0x6c] sm:$0xf]
  %v623 = vld [vmem:[%s7 + $0x70] sm:$0xf]
  %v624 = vld [vmem:[%s7 + $0x74] sm:$0xf]
  %v625 = vld [vmem:[%s7 + $0x78] sm:$0xf]
  %v626 = vld [vmem:[%s7 + $0x7c] sm:$0xf]
  %v627 = vld [vmem:[%s8] sm:$0x1]
  %v629 = vperm.slane %v627, 0
  %v663 = vunpack.c.l.b16 %v595
  %v664 = vunpack.c.l.b16 %v596
  %v665 = vunpack.c.l.b16 %v597
  %v666 = vunpack.c.l.b16 %v598
  %v667 = vunpack.c.l.b16 %v599
  %v668 = vunpack.c.l.b16 %v600
  %v669 = vunpack.c.l.b16 %v601
  %v670 = vunpack.c.l.b16 %v602
  %v671 = vunpack.c.l.b16 %v603
  %v672 = vunpack.c.l.b16 %v604
  %v673 = vunpack.c.l.b16 %v605
  %v674 = vunpack.c.l.b16 %v606
  %v675 = vunpack.c.l.b16 %v607
  %v676 = vunpack.c.l.b16 %v608
  %v677 = vunpack.c.l.b16 %v609
  %v678 = vunpack.c.l.b16 %v610
  %v679 = vunpack.c.l.b16 %v611
  %v680 = vunpack.c.l.b16 %v612
  %v681 = vunpack.c.l.b16 %v613
  %v682 = vunpack.c.l.b16 %v614
  %v683 = vunpack.c.l.b16 %v615
  %v684 = vunpack.c.l.b16 %v616
  %v685 = vunpack.c.l.b16 %v617
  %v686 = vunpack.c.l.b16 %v618
  %v687 = vunpack.c.l.b16 %v619
  %v688 = vunpack.c.l.b16 %v620
  %v689 = vunpack.c.l.b16 %v621
  %v690 = vunpack.c.l.b16 %v622
  %v691 = vunpack.c.l.b16 %v623
  %v692 = vunpack.c.l.b16 %v624
  %v693 = vunpack.c.l.b16 %v625
  %v694 = vunpack.c.l.b16 %v626
  %v695 = vpack.c.b16 %v664, %v663
  %v696 = vpack.c.b16 %v666, %v665
  %v697 = vpack.c.b16 %v668, %v667
  %v698 = vpack.c.b16 %v670, %v669
  %v699 = vpack.c.b16 %v672, %v671
  %v700 = vpack.c.b16 %v674, %v673
  %v701 = vpack.c.b16 %v676, %v675
  %v702 = vpack.c.b16 %v678, %v677
  %v703 = vpack.c.b16 %v680, %v679
  %v704 = vpack.c.b16 %v682, %v681
  %v705 = vpack.c.b16 %v684, %v683
  %v706 = vpack.c.b16 %v686, %v685
  %v707 = vpack.c.b16 %v688, %v687
  %v708 = vpack.c.b16 %v690, %v689
  %v709 = vpack.c.b16 %v692, %v691
  %v710 = vpack.c.b16 %v694, %v693
  %727 = vmatpush.bf16.msra.mxu0 %v702
  %728 = vmatpush.bf16.msra.mxu0 %v701
  %729 = vmatpush.bf16.msra.mxu0 %v700
  %730 = vmatpush.bf16.msra.mxu0 %v699
  %731 = vmatpush.bf16.msra.mxu0 %v698
  %732 = vmatpush.bf16.msra.mxu0 %v697
  %733 = vmatpush.bf16.msra.mxu0 %v696
  %734 = vmatpush.bf16.msra.mxu0 %v695
  %735 = vmatmul.bf16.gmra.mxu0 %v593
  %v736 = vpop.f32.mrf.mxu0
  %v737 = vadd.f32 %v629, %v736
  %v738 = vpop.f32.mrf.mxu0
  %739 = vdwg.mxu0
  %740 = vmatpush.bf16.msra.mxu0 %v710
  %741 = vmatpush.bf16.msra.mxu0 %v709
  %742 = vmatpush.bf16.msra.mxu0 %v708
  %743 = vmatpush.bf16.msra.mxu0 %v707
  %744 = vmatpush.bf16.msra.mxu0 %v706
  %745 = vmatpush.bf16.msra.mxu0 %v705
  %746 = vmatpush.bf16.msra.mxu0 %v704
  %747 = vmatpush.bf16.msra.mxu0 %v703
  %748 = vmatmul.bf16.gmra.mxu0 %v594
  %v749 = vpop.f32.mrf.mxu0
  %v750 = vadd.f32 %v737, %v749
  %v751 = vpop.f32.mrf.mxu0
  %752 = vdwg.mxu0
  %753 = vst [vmem:[%s9] sm:$0xff] %v750
  // Predicated region
  $region38: #{mlp_forward.1} parent=0 // pred_check
    _
  $region39: #{mlp_forward.1} parent=0 // pred_check_branch
    %755 = sbr.rel (0) target = $region41
  $region40: #{mlp_forward.1} parent=0 // pred_region
    _
  $region41: #{mlp_forward.1} parent=0 // pred_fallthru
    _
  // Predicated region
  $region42: #{mlp_forward.1} parent=0 // pred_check
    _
  $region43: #{mlp_forward.1} parent=0 // pred_check_branch
    %757 = sbr.rel (0) target = $region45
  $region44: #{mlp_forward.1} parent=0 // pred_region
    _
  $region45: #{mlp_forward.1} parent=0 // pred_fallthru
    _

</llo_original>
